<compile_context>
chip_gen: v7x
topology: tpu7x:2x2x1
jax: 0.10.0
libtpu: 0.0.40
codegen_flags: <defaults>
</compile_context>

<pallas_src>
import jax
import jax.numpy as jnp
from jax.experimental import pallas as pl
from jax.experimental.pallas import tpu as pltpu


def _make_dma_copy_kernel(chunks):
    """Build a kernel copying row-`chunks` of a 2-D slab HBM->HBM via DMA."""

    def kernel(x_hbm, o_hbm, sem):
        copies = []
        # Start all chunk DMAs first (overlap across DMA engines), then wait.
        for c, (start, size) in enumerate(chunks):
            cp = pltpu.make_async_copy(
                x_hbm.at[pl.ds(start, size), :],
                o_hbm.at[pl.ds(start, size), :],
                sem.at[c],
            )
            cp.start()
            copies.append(cp)
        for cp in copies:
            cp.wait()

    return kernel


class Reshape:
    """JAX/Pallas equivalent of the PyTorch Reshape module."""

    LANES = 128
    MAX_COLS = 16384              # widest lane dim considered for the slab
    MIN_CHUNK_BYTES = 1 << 20     # each DMA chunk at least ~1 MiB
    MAX_CHUNKS = 8                # cap on outstanding DMA descriptors

    def __init__(self, *args):
        self.shape = args

    def __call__(self, x):
        target_shape = self.shape
        total = x.size
        itemsize = x.dtype.itemsize

        if total == 0 or total % self.LANES != 0:
            # Row-major reshape is a pure metadata op: no data movement.
            return jnp.reshape(x, target_shape)

        # dtype-aware sublane packing: 8 rows f32, 16 bf16, 32 int8/fp8.
        sublane_pack = max(8, 32 // itemsize)

        # Widest lane dim (multiple of 128) dividing the element count,
        # preferring slabs at least sublane_pack rows tall (no thin slabs).
        divisors = [
            c
            for c in range(self.LANES, min(self.MAX_COLS, total) + 1, self.LANES)
            if total % c == 0
        ]
        tall = [c for c in divisors if total // c >= sublane_pack]
        cols = max(tall) if tall else max(divisors)
        rows = total // cols
        total_bytes = total * itemsize

        # Split the copy into a few large row chunks (static at trace time).
        n_chunks = max(
            1, min(self.MAX_CHUNKS, rows, total_bytes // self.MIN_CHUNK_BYTES)
        )
        chunk_rows = pl.cdiv(rows, n_chunks)
        chunks = []
        start = 0
        while start < rows:
            size = min(chunk_rows, rows - start)
            chunks.append((start, size))
            start += size

        # Glue: flatten to the lane-dense slab (row-major order preserved).
        flat = jnp.reshape(x, (rows, cols))

        out2d = pl.pallas_call(
            _make_dma_copy_kernel(tuple(chunks)),
            out_shape=jax.ShapeDtypeStruct((rows, cols), x.dtype),
            in_specs=[pl.BlockSpec(memory_space=pl.ANY)],
            out_specs=pl.BlockSpec(memory_space=pl.ANY),
            scratch_shapes=[pltpu.SemaphoreType.DMA((len(chunks),))],
            cost_estimate=pl.CostEstimate(
                flops=0,
                transcendentals=0,
                bytes_accessed=2 * total_bytes,
            ),
        )(flat)

        # Glue: view the copied buffer as the requested target shape.
        return jnp.reshape(out2d, target_shape)


if __name__ == "__main__":
    key = jax.random.PRNGKey(0)
    # NCHW-like input, as a PyTorch conv stack would produce.
    x = jax.random.normal(key, (2, 4, 16, 16), dtype=jnp.float32)

    # e.g. flatten each batch element: Reshape(2, 4*16*16)
    reshape_mod = Reshape(2, 4 * 16 * 16)

    ref = jnp.reshape(x, (2, 4 * 16 * 16))

    y = reshape_mod(x)
    y = jax.block_until_ready(y)

    # Correctness check against plain JAX (== torch.reshape semantics).
    assert y.shape == (2, 1024), y.shape
    assert y.dtype == x.dtype
    assert bool(jnp.array_equal(y, ref))

    print("KERNEL_OK")
</pallas_src>

<mosaic_0001>
module attributes {stable_mosaic.version = 11 : i64} {
  func.func @kernel(%arg0: memref<8x256xf32, #tpu.memory_space<any>>, %arg1: memref<8x256xf32, #tpu.memory_space<any>>, %arg2: memref<1x!tpu.dma_semaphore, #tpu.memory_space<semaphore_mem>>) attributes {dimension_semantics = [], scalar_prefetch = 0 : i64, scratch_operands = 1 : i64, tpu.core_type = #tpu.core_type<tc>} {
    %c0_i32 = arith.constant 0 : i32
    %c0_i32_0 = arith.constant 0 : i32
    %c0_i32_1 = arith.constant 0 : i32
    %0 = tpu.memref_slice %arg0[%c0_i32_0, %c0_i32_1] : memref<8x256xf32, #tpu.memory_space<any>> -> memref<8x256xf32, #tpu.memory_space<any>>
    %c0_i32_2 = arith.constant 0 : i32
    %c0_i32_3 = arith.constant 0 : i32
    %1 = tpu.memref_slice %arg1[%c0_i32_2, %c0_i32_3] : memref<8x256xf32, #tpu.memory_space<any>> -> memref<8x256xf32, #tpu.memory_space<any>>
    %2 = tpu.memref_slice %arg2[%c0_i32] : memref<1x!tpu.dma_semaphore, #tpu.memory_space<semaphore_mem>> -> memref<1x!tpu.dma_semaphore, #tpu.memory_space<semaphore_mem>>
    %3 = tpu.memref_squeeze %2 : memref<1x!tpu.dma_semaphore, #tpu.memory_space<semaphore_mem>> -> memref<!tpu.dma_semaphore, #tpu.memory_space<semaphore_mem>>
    tpu.enqueue_dma source(%0 : memref<8x256xf32, #tpu.memory_space<any>>) target(%1 : memref<8x256xf32, #tpu.memory_space<any>>) target_semaphore(%3 : memref<!tpu.dma_semaphore, #tpu.memory_space<semaphore_mem>>)
    %c0_i32_4 = arith.constant 0 : i32
    %c0_i32_5 = arith.constant 0 : i32
    %c0_i32_6 = arith.constant 0 : i32
    %4 = tpu.memref_slice %arg0[%c0_i32_5, %c0_i32_6] : memref<8x256xf32, #tpu.memory_space<any>> -> memref<8x256xf32, #tpu.memory_space<any>>
    %c0_i32_7 = arith.constant 0 : i32
    %c0_i32_8 = arith.constant 0 : i32
    %5 = tpu.memref_slice %arg1[%c0_i32_7, %c0_i32_8] : memref<8x256xf32, #tpu.memory_space<any>> -> memref<8x256xf32, #tpu.memory_space<any>>
    %6 = tpu.memref_slice %arg2[%c0_i32_4] : memref<1x!tpu.dma_semaphore, #tpu.memory_space<semaphore_mem>> -> memref<1x!tpu.dma_semaphore, #tpu.memory_space<semaphore_mem>>
    %7 = tpu.memref_squeeze %6 : memref<1x!tpu.dma_semaphore, #tpu.memory_space<semaphore_mem>> -> memref<!tpu.dma_semaphore, #tpu.memory_space<semaphore_mem>>
    tpu.wait_dma2 semaphore(%7 : memref<!tpu.dma_semaphore, #tpu.memory_space<semaphore_mem>>) src(%4 : memref<8x256xf32, #tpu.memory_space<any>>) dst(%5 : memref<8x256xf32, #tpu.memory_space<any>>)
    return
  }
}

</mosaic_0001>

<llo_original>
// kernel: tpu_custom_call.1
$region0: #{tpu_custom_call.1}
  #allocation0 [shape = 'u32[]', space=smem, size = 0x4, offset = 0x4, fixed_abs, tag = 'smem constant byte address 0x4 - core index']
  #allocation1 [shape = 'u32[144,128]{1,0:T(1,128)}', space=vmem, size = 0x12000, scoped, tag = 'internal scratch']
  #allocation2 [shape = 's32[1]{0}', space=sflag, size = 0x4, scoped, tag = 'scratch operand']
  #allocation3 [shape = 's32[]', space=sflag, size = 0x4, offset = 0, fixed_abs, tag = 'sflag constant byte address 0x0 - dummy sync flag']
  #allocation4 [shape = 'u32[0]{0}', space=smem, size = 0, offset = 0, fixed_abs, tag = 'smem constant byte address 0x0 - null']
  %s0 = inlined_call_operand.hbm [shape: f32[8,256], index: 0, kind: input, shape index: {}]
  %s1 = inlined_call_operand.hbm [shape: f32[8,256], index: 1, kind: output, shape index: {}]
  %s2 = sld [smem:[#allocation0]]
  $region2: #{tpu_custom_call.1} parent=0
    _
  %s4 = ssub.s32 1, %s2
  %s5 = scalar_select 0, %s4, %s2
  %s7 = sshll.u32 1, 14
  %s8 = sxor.u32 4294967295, %s7
  %s11 = sshll.u32 3, 24
  %s12 = sxor.u32 4294967295, %s11
  %s13 = sand.u32 0, %s12
  %s15 = sor.u32 %s13, 0
  %18 = dma.general %s0, 256, %s1, [#allocation2], [#allocation3], [#allocation4], %s15, 0
  %s19 = smul.u32 8, 1
  %s20 = smul.u32 %s19, 2
  %s21 = sshll.u32 %s20, 4
  %22 = dma.done [#allocation2], %s21
  %23 = vsyncmov [#allocation2]
  %s24 = vpop.sfrf %23
  %p25 = scmp.eq.s32.totalorder %s24, 0
  %p26 = pneg %p25
  %28 = shalt.err (%p26)

</llo_original>
